<compile_context>
chip_gen: v6e
topology: v6e:2x2x1
jax: 0.10.0
libtpu: 0.0.40
codegen_flags: <defaults>
</compile_context>

<pallas_src>
import functools

import jax
import jax.numpy as jnp
import numpy as np
from jax.experimental import pallas as pl
from jax.experimental.pallas import tpu as pltpu


def _rel_pos_copy_kernel(ppad_ref, out_ref, *, length_q, tile_q):
    # ppad_ref: (Lq + Lk - 1, U) padded / clamp-replicated table (VMEM resident).
    # out_ref:  (tile_q, Lk, U) output tile for query rows [i*tile_q, (i+1)*tile_q).
    i = pl.program_id(0)
    length_k = out_ref.shape[1]
    for r in range(tile_q):  # static unroll; tile_q is small
        q = i * tile_q + r
        start = (length_q - 1) - q          # window start, always in [0, Lq-1]
        out_ref[r, :, :] = ppad_ref[pl.ds(start, length_k), :]


def _pick_tile_q(length_q, length_k, num_units, requested=None,
                 budget_bytes=16 * 1024 * 1024):
    """Largest row tile that divides Lq and keeps the double-buffered output
    block comfortably inside scoped VMEM (conservative enough for v7x)."""
    if requested is not None and requested >= 1 and length_q % requested == 0:
        return int(requested)
    row_bytes = length_k * num_units * 4
    best = 1
    for t in range(1, min(64, length_q) + 1):
        if length_q % t == 0 and 2 * t * row_bytes <= budget_bytes:
            best = t
    return best


@functools.partial(jax.jit, static_argnums=(0, 1, 3, 4))
def relative_position_embeddings(length_q, length_k, embeddings_table,
                                 max_relative_position, tile_q=None):
    """Returns embeddings_table[clip(k-q, -mr, mr) + mr]  ->  (Lq, Lk, U)."""
    Lq, Lk = int(length_q), int(length_k)
    mr = int(max_relative_position)
    U = embeddings_table.shape[1]

    # Tiny one-time padded table: ppad[j] = table[clip(j - (Lq-1), -mr, mr) + mr].
    rel = jnp.arange(-(Lq - 1), Lk, dtype=jnp.int32)       # (Lq + Lk - 1,)
    idx = jnp.clip(rel, -mr, mr) + mr
    ppad = jnp.take(embeddings_table, idx, axis=0)          # (Lq + Lk - 1, U)
    P = Lq + Lk - 1

    tq = _pick_tile_q(Lq, Lk, U, requested=tile_q)
    grid = (Lq // tq,)

    kernel = functools.partial(_rel_pos_copy_kernel, length_q=Lq, tile_q=tq)

    out = pl.pallas_call(
        kernel,
        out_shape=jax.ShapeDtypeStruct((Lq, Lk, U), embeddings_table.dtype),
        grid=grid,
        # Padded table: full-array block, same block every step -> stays resident.
        in_specs=[pl.BlockSpec((P, U), lambda i: (0, 0))],
        # Output: tq query rows per step, pipelined / double-buffered writeback.
        out_specs=pl.BlockSpec((tq, Lk, U), lambda i: (i, 0, 0)),
        compiler_params=pltpu.CompilerParams(
            dimension_semantics=("parallel",),
        ),
    )(ppad)
    return out


def relative_position_forward(x, embeddings_table, max_relative_position,
                              tile_q=None):
    """Pallas equivalent of RelativePosition.forward.

    Only x.shape[-2:] = (length_q, length_k) is consumed; x's values are never
    read or DMA'd.  Output: (length_q, length_k, num_units) float32.
    """
    length_q, length_k = int(x.shape[-2]), int(x.shape[-1])
    return relative_position_embeddings(length_q, length_k, embeddings_table,
                                        max_relative_position, tile_q)


def make_embeddings_table(key, num_units, max_relative_position):
    """Deterministic xavier_uniform_ init matching nn.init.xavier_uniform_."""
    T = 2 * max_relative_position + 1
    fan_out, fan_in = T, num_units
    bound = float(np.sqrt(6.0 / (fan_in + fan_out)))
    return jax.random.uniform(
        key, (T, num_units), dtype=jnp.float32, minval=-bound, maxval=bound
    )


def reference_forward(x, table, max_relative_position):
    """Plain-JAX reference mirroring the PyTorch forward (sanity check)."""
    Lq, Lk = x.shape[-2], x.shape[-1]
    rq = jnp.arange(Lq)
    rk = jnp.arange(Lk)
    dist = rk[None, :] - rq[:, None]
    idx = jnp.clip(dist, -max_relative_position, max_relative_position) \
        + max_relative_position
    return table[idx]


if __name__ == "__main__":
    key = jax.random.PRNGKey(0)
    k_table, k_x = jax.random.split(key)

    num_units = 32
    max_relative_position = 8   # small for the example (module default is 128);
                                # chosen < Lq so the clamp path is exercised.

    table = make_embeddings_table(k_table, num_units, max_relative_position)

    # x: only its last two dims (length_q=16, length_k=16) matter.
    x = jax.random.normal(k_x, (2, 4, 16, 16), dtype=jnp.float32)

    out = relative_position_forward(x, table, max_relative_position, tile_q=8)
    out = jax.block_until_ready(out)

    ref = reference_forward(x, table, max_relative_position)
    assert out.shape == (16, 16, num_units), out.shape
    # Pure copy of table rows -> must be bit-exact.
    np.testing.assert_allclose(np.asarray(out), np.asarray(ref), rtol=0, atol=0)

    print("KERNEL_OK")
</pallas_src>

<mosaic_0001>
module attributes {stable_mosaic.version = 11 : i64} {
  func.func @_rel_pos_copy_kernel(%arg0: i32, %arg1: memref<31x32xf32, #tpu.memory_space<vmem>>, %arg2: memref<8x16x32xf32, #tpu.memory_space<vmem>>) attributes {dimension_semantics = [#tpu.dimension_semantics<parallel>], iteration_bounds = array<i64: 2>, scalar_prefetch = 0 : i64, scratch_operands = 0 : i64, tpu.core_type = #tpu.core_type<tc>, window_params = [{pipeline_mode = #tpu.pipeline_mode<synchronous>, transform_indices = @transform_0, window_bounds = array<i64: 31, 32>}, {transform_indices = @transform_1, window_bounds = array<i64: 8, 16, 32>}]} {
    %c8_i32 = arith.constant 8 : i32
    %0 = arith.muli %arg0, %c8_i32 : i32
    %c0_i32 = arith.constant 0 : i32
    %1 = arith.addi %0, %c0_i32 : i32
    %c15_i32 = arith.constant 15 : i32
    %2 = arith.subi %c15_i32, %1 : i32
    %3 = arith.index_cast %2 : i32 to index
    %c0 = arith.constant 0 : index
    %4 = vector.load %arg1[%3, %c0] : memref<31x32xf32, #tpu.memory_space<vmem>>, vector<16x32xf32>
    %c0_0 = arith.constant 0 : index
    %c0_1 = arith.constant 0 : index
    %c0_2 = arith.constant 0 : index
    %5 = vector.load %arg2[%c0_0, %c0_1, %c0_2] : memref<8x16x32xf32, #tpu.memory_space<vmem>>, vector<1x16x32xf32>
    %6 = vector.shape_cast %5 : vector<1x16x32xf32> to vector<16x32xf32>
    %7 = vector.shape_cast %4 : vector<16x32xf32> to vector<1x16x32xf32>
    tpu.vector_store %arg2[%c0_0, %c0_1, %c0_2], %7 {strides = array<i32>} : memref<8x16x32xf32, #tpu.memory_space<vmem>>, vector<1x16x32xf32>,
    %c8_i32_3 = arith.constant 8 : i32
    %8 = arith.muli %arg0, %c8_i32_3 : i32
    %c1_i32 = arith.constant 1 : i32
    %9 = arith.addi %8, %c1_i32 : i32
    %c15_i32_4 = arith.constant 15 : i32
    %10 = arith.subi %c15_i32_4, %9 : i32
    %11 = arith.index_cast %10 : i32 to index
    %c0_5 = arith.constant 0 : index
    %12 = vector.load %arg1[%11, %c0_5] : memref<31x32xf32, #tpu.memory_space<vmem>>, vector<16x32xf32>
    %c1 = arith.constant 1 : index
    %c0_6 = arith.constant 0 : index
    %c0_7 = arith.constant 0 : index
    %13 = vector.load %arg2[%c1, %c0_6, %c0_7] : memref<8x16x32xf32, #tpu.memory_space<vmem>>, vector<1x16x32xf32>
    %14 = vector.shape_cast %13 : vector<1x16x32xf32> to vector<16x32xf32>
    %15 = vector.shape_cast %12 : vector<16x32xf32> to vector<1x16x32xf32>
    tpu.vector_store %arg2[%c1, %c0_6, %c0_7], %15 {strides = array<i32>} : memref<8x16x32xf32, #tpu.memory_space<vmem>>, vector<1x16x32xf32>,
    %c8_i32_8 = arith.constant 8 : i32
    %16 = arith.muli %arg0, %c8_i32_8 : i32
    %c2_i32 = arith.constant 2 : i32
    %17 = arith.addi %16, %c2_i32 : i32
    %c15_i32_9 = arith.constant 15 : i32
    %18 = arith.subi %c15_i32_9, %17 : i32
    %19 = arith.index_cast %18 : i32 to index
    %c0_10 = arith.constant 0 : index
    %20 = vector.load %arg1[%19, %c0_10] : memref<31x32xf32, #tpu.memory_space<vmem>>, vector<16x32xf32>
    %c2 = arith.constant 2 : index
    %c0_11 = arith.constant 0 : index
    %c0_12 = arith.constant 0 : index
    %21 = vector.load %arg2[%c2, %c0_11, %c0_12] : memref<8x16x32xf32, #tpu.memory_space<vmem>>, vector<1x16x32xf32>
    %22 = vector.shape_cast %21 : vector<1x16x32xf32> to vector<16x32xf32>
    %23 = vector.shape_cast %20 : vector<16x32xf32> to vector<1x16x32xf32>
    tpu.vector_store %arg2[%c2, %c0_11, %c0_12], %23 {strides = array<i32>} : memref<8x16x32xf32, #tpu.memory_space<vmem>>, vector<1x16x32xf32>,
    %c8_i32_13 = arith.constant 8 : i32
    %24 = arith.muli %arg0, %c8_i32_13 : i32
    %c3_i32 = arith.constant 3 : i32
    %25 = arith.addi %24, %c3_i32 : i32
    %c15_i32_14 = arith.constant 15 : i32
    %26 = arith.subi %c15_i32_14, %25 : i32
    %27 = arith.index_cast %26 : i32 to index
    %c0_15 = arith.constant 0 : index
    %28 = vector.load %arg1[%27, %c0_15] : memref<31x32xf32, #tpu.memory_space<vmem>>, vector<16x32xf32>
    %c3 = arith.constant 3 : index
    %c0_16 = arith.constant 0 : index
    %c0_17 = arith.constant 0 : index
    %29 = vector.load %arg2[%c3, %c0_16, %c0_17] : memref<8x16x32xf32, #tpu.memory_space<vmem>>, vector<1x16x32xf32>
    %30 = vector.shape_cast %29 : vector<1x16x32xf32> to vector<16x32xf32>
    %31 = vector.shape_cast %28 : vector<16x32xf32> to vector<1x16x32xf32>
    tpu.vector_store %arg2[%c3, %c0_16, %c0_17], %31 {strides = array<i32>} : memref<8x16x32xf32, #tpu.memory_space<vmem>>, vector<1x16x32xf32>,
    %c8_i32_18 = arith.constant 8 : i32
    %32 = arith.muli %arg0, %c8_i32_18 : i32
    %c4_i32 = arith.constant 4 : i32
    %33 = arith.addi %32, %c4_i32 : i32
    %c15_i32_19 = arith.constant 15 : i32
    %34 = arith.subi %c15_i32_19, %33 : i32
    %35 = arith.index_cast %34 : i32 to index
    %c0_20 = arith.constant 0 : index
    %36 = vector.load %arg1[%35, %c0_20] : memref<31x32xf32, #tpu.memory_space<vmem>>, vector<16x32xf32>
    %c4 = arith.constant 4 : index
    %c0_21 = arith.constant 0 : index
    %c0_22 = arith.constant 0 : index
    %37 = vector.load %arg2[%c4, %c0_21, %c0_22] : memref<8x16x32xf32, #tpu.memory_space<vmem>>, vector<1x16x32xf32>
    %38 = vector.shape_cast %37 : vector<1x16x32xf32> to vector<16x32xf32>
    %39 = vector.shape_cast %36 : vector<16x32xf32> to vector<1x16x32xf32>
    tpu.vector_store %arg2[%c4, %c0_21, %c0_22], %39 {strides = array<i32>} : memref<8x16x32xf32, #tpu.memory_space<vmem>>, vector<1x16x32xf32>,
    %c8_i32_23 = arith.constant 8 : i32
    %40 = arith.muli %arg0, %c8_i32_23 : i32
    %c5_i32 = arith.constant 5 : i32
    %41 = arith.addi %40, %c5_i32 : i32
    %c15_i32_24 = arith.constant 15 : i32
    %42 = arith.subi %c15_i32_24, %41 : i32
    %43 = arith.index_cast %42 : i32 to index
    %c0_25 = arith.constant 0 : index
    %44 = vector.load %arg1[%43, %c0_25] : memref<31x32xf32, #tpu.memory_space<vmem>>, vector<16x32xf32>
    %c5 = arith.constant 5 : index
    %c0_26 = arith.constant 0 : index
    %c0_27 = arith.constant 0 : index
    %45 = vector.load %arg2[%c5, %c0_26, %c0_27] : memref<8x16x32xf32, #tpu.memory_space<vmem>>, vector<1x16x32xf32>
    %46 = vector.shape_cast %45 : vector<1x16x32xf32> to vector<16x32xf32>
    %47 = vector.shape_cast %44 : vector<16x32xf32> to vector<1x16x32xf32>
    tpu.vector_store %arg2[%c5, %c0_26, %c0_27], %47 {strides = array<i32>} : memref<8x16x32xf32, #tpu.memory_space<vmem>>, vector<1x16x32xf32>,
    %c8_i32_28 = arith.constant 8 : i32
    %48 = arith.muli %arg0, %c8_i32_28 : i32
    %c6_i32 = arith.constant 6 : i32
    %49 = arith.addi %48, %c6_i32 : i32
    %c15_i32_29 = arith.constant 15 : i32
    %50 = arith.subi %c15_i32_29, %49 : i32
    %51 = arith.index_cast %50 : i32 to index
    %c0_30 = arith.constant 0 : index
    %52 = vector.load %arg1[%51, %c0_30] : memref<31x32xf32, #tpu.memory_space<vmem>>, vector<16x32xf32>
    %c6 = arith.constant 6 : index
    %c0_31 = arith.constant 0 : index
    %c0_32 = arith.constant 0 : index
    %53 = vector.load %arg2[%c6, %c0_31, %c0_32] : memref<8x16x32xf32, #tpu.memory_space<vmem>>, vector<1x16x32xf32>
    %54 = vector.shape_cast %53 : vector<1x16x32xf32> to vector<16x32xf32>
    %55 = vector.shape_cast %52 : vector<16x32xf32> to vector<1x16x32xf32>
    tpu.vector_store %arg2[%c6, %c0_31, %c0_32], %55 {strides = array<i32>} : memref<8x16x32xf32, #tpu.memory_space<vmem>>, vector<1x16x32xf32>,
    %c8_i32_33 = arith.constant 8 : i32
    %56 = arith.muli %arg0, %c8_i32_33 : i32
    %c7_i32 = arith.constant 7 : i32
    %57 = arith.addi %56, %c7_i32 : i32
    %c15_i32_34 = arith.constant 15 : i32
    %58 = arith.subi %c15_i32_34, %57 : i32
    %59 = arith.index_cast %58 : i32 to index
    %c0_35 = arith.constant 0 : index
    %60 = vector.load %arg1[%59, %c0_35] : memref<31x32xf32, #tpu.memory_space<vmem>>, vector<16x32xf32>
    %c7 = arith.constant 7 : index
    %c0_36 = arith.constant 0 : index
    %c0_37 = arith.constant 0 : index
    %61 = vector.load %arg2[%c7, %c0_36, %c0_37] : memref<8x16x32xf32, #tpu.memory_space<vmem>>, vector<1x16x32xf32>
    %62 = vector.shape_cast %61 : vector<1x16x32xf32> to vector<16x32xf32>
    %63 = vector.shape_cast %60 : vector<16x32xf32> to vector<1x16x32xf32>
    tpu.vector_store %arg2[%c7, %c0_36, %c0_37], %63 {strides = array<i32>} : memref<8x16x32xf32, #tpu.memory_space<vmem>>, vector<1x16x32xf32>,
    return
  }
  func.func @transform_0(%arg0: i32) -> (i32, i32) {
    %c0_i32 = arith.constant 0 : i32
    %c0_i32_0 = arith.constant 0 : i32
    %c0_i32_1 = arith.constant 0 : i32
    return %c0_i32, %c0_i32_0 : i32, i32
  }
  func.func @transform_1(%arg0: i32) -> (i32, i32, i32) {
    %c0_i32 = arith.constant 0 : i32
    %c0_i32_0 = arith.constant 0 : i32
    %c0_i32_1 = arith.constant 0 : i32
    return %arg0, %c0_i32, %c0_i32_0 : i32, i32, i32
  }
}

</mosaic_0001>

<llo_original>
// kernel: relative_position_embeddings.1
$region0: #{relative_position_embeddings.1}
  #allocation0 [shape = 'u32[]', space=smem, size = 0x4, offset = 0x4, fixed_abs, tag = 'smem constant byte address 0x4 - core index']
  #allocation1 [shape = 'u32[144,128]{1,0:T(1,128)}', space=vmem, size = 0x12000, scoped, tag = 'internal scratch']
  %s0 = inlined_call_operand.vmem [shape: f32[31,32], index: 0, kind: input, shape index: {}]
  %s1 = inlined_call_operand.hbm [shape: f32[16,16,32], index: 1, kind: output, shape index: {}]
  %s2 = sld [smem:[#allocation0]]
  $region37: #{relative_position_embeddings.1} parent=0
    _
  %s4 = ssub.s32 1, %s2
  %s5 = scalar_select 0, %s4, %s2
  $region1: #{relative_position_embeddings.1} parent=0
    #allocation2 [shape = 'u8[131072]{0}', space=vmem, size = 0x20000, scoped, tag = 'output window, operand 0']
    #allocation3 [shape = 's32[2]{0}', space=sflag, size = 0x8, scoped, tag = 'scoped memory for relative_position_embeddings.1']
    %6 = vsyncpa [#allocation3], 0
    %s7 = scalar_lea.sflag [#allocation3], 1
    %8 = vsyncpa %s7, 0
    loop: start=0, step=1, limit=4
    $region2: #{relative_position_embeddings.1} parent=1 // loop_pre_header
      _
    $region3: #{relative_position_embeddings.1} parent=1 // loop_header
      %s10 = sphi 0, %s14
      %p11 = scmp.ge.s32.totalorder %s10, 4
      %s18 = sphi 0, %s18
      %s20 = sphi 0, %s18
      %s21 = sphi 0, %s20
      %s35 = sphi 0, %s21
      %s41 = sphi 0, %s43
      %s44 = sphi 0, %s41
      %s45 = sphi 0, %s44
      %s61 = sphi 0, %s45
    $region4: #{relative_position_embeddings.1} parent=1 // loop_header_branch
      %13 = sbr.rel (%p11) target = $region8
    $region5: #{relative_position_embeddings.1} parent=1 // loop_body
      %s15 = ssub.s32 %s10, 1
      %s16 = ssub.s32 %s10, 2
      %s17 = sadd.s32 %s10, 1
      %s19 = sadd.s32 %s18, 1
      %p22 = scmp.eq.s32.totalorder %s10, 1
      %p23 = scmp.ne.s32.totalorder %s18, %s20
      %p24 = scmp.eq.s32.totalorder %s10, 0
      %p25 = por %p23, %p24
      %p26 = scmp.ne.s32.totalorder %s18, %s20
      %p27 = scmp.eq.s32.totalorder %s15, 1
      %p28 = por %p26, %p27
      %p29 = scmp.ne.s32.totalorder %s20, %s21
      %p30 = scmp.eq.s32.totalorder %s15, 0
      %p31 = por %p29, %p30
      %p32 = scmp.ne.s32.totalorder %s20, %s21
      %p33 = scmp.eq.s32.totalorder %s16, 1
      %p34 = por %p32, %p33
      %p36 = scmp.ne.s32.totalorder %s21, %s35
      %p37 = scmp.eq.s32.totalorder %s16, 0
      %p38 = por %p36, %p37
      %s39 = ssub.s32 %s10, %s17
      %p40 = scmp.eq.s32.totalorder %s39, 0
      %s42 = sadd.s32 %s41, 1
      %s43 = scalar_select %p40, %s41, %s42
      %p46 = pneg %p40
      %p47 = scmp.eq.s32.totalorder %s10, 1
      %p48 = por %p46, %p47
      %p49 = scmp.ne.s32.totalorder %s41, %s44
      %p50 = scmp.eq.s32.totalorder %s10, 0
      %p51 = por %p49, %p50
      %p52 = scmp.ne.s32.totalorder %s41, %s44
      %p53 = scmp.eq.s32.totalorder %s15, 1
      %p54 = por %p52, %p53
      %p55 = scmp.ne.s32.totalorder %s44, %s45
      %p56 = scmp.eq.s32.totalorder %s15, 0
      %p57 = por %p55, %p56
      %p58 = scmp.ne.s32.totalorder %s44, %s45
      %p59 = scmp.eq.s32.totalorder %s16, 1
      %p60 = por %p58, %p59
      %p62 = scmp.ne.s32.totalorder %s45, %s61
      %p63 = scmp.eq.s32.totalorder %s16, 0
      %p64 = por %p62, %p63
      %p65 = scmp.le.s32.totalorder 1, %s10
      %p66 = scmp.lt.s32.totalorder %s10, 3
      %p67 = pnand %p65, %p66
      %p68 = pneg %p67
      // Predicated region
      $region9: #{relative_position_embeddings.1} parent=5 // pred_check
        _
      $region10: #{relative_position_embeddings.1} parent=5 // pred_check_branch
        %70 = sbr.rel (%p67) target = $region12
      $region11: #{relative_position_embeddings.1} parent=5 // pred_region
        %s71 = ssub.s32 %s10, 1
        // Predicated region
        $region13: #{relative_position_embeddings.1} parent=11 // pred_check
          %p72 = pneg %p31
        $region14: #{relative_position_embeddings.1} parent=11 // pred_check_branch
          %74 = sbr.rel (%p72) target = $region16
        $region15: #{relative_position_embeddings.1} parent=11 // pred_region
          _
        $region16: #{relative_position_embeddings.1} parent=11 // pred_fallthru
          _
      $region12: #{relative_position_embeddings.1} parent=5 // pred_fallthru
        _
      %p75 = scmp.lt.s32.totalorder %s10, 2
      // Predicated region
      $region17: #{relative_position_embeddings.1} parent=5 // pred_check
        %p76 = pneg %p75
      $region18: #{relative_position_embeddings.1} parent=5 // pred_check_branch
        %78 = sbr.rel (%p76) target = $region20
      $region19: #{relative_position_embeddings.1} parent=5 // pred_region
        _
      $region20: #{relative_position_embeddings.1} parent=5 // pred_fallthru
        _
      %p79 = scmp.le.s32.totalorder 1, %s10
      %p80 = scmp.lt.s32.totalorder %s10, 3
      %p81 = pnand %p79, %p80
      %p82 = pneg %p81
      // Predicated region
      $region21: #{relative_position_embeddings.1} parent=5 // pred_check
        _
      $region22: #{relative_position_embeddings.1} parent=5 // pred_check_branch
        %84 = sbr.rel (%p81) target = $region24
      $region23: #{relative_position_embeddings.1} parent=5 // pred_region
        %s85 = ssub.s32 %s10, 1
        %p86 = pneg %p31
        %p87 = pneg %p28
        %p88 = pneg %p57
        %p89 = pneg %p54
        %s90 = sand.u32 %s44, 1
        %s91 = scalar_lea.sflag [#allocation3], %s90
        %s92 = sand.u32 %s44, 1
        %s93 = smul.addr %s92, 128
        %s94 = scalar_lea.vmem [#allocation2], %s93
        %s95 = smul.u32 8, %s15
        %s96 = smul.u32 %s15, 8
        %s97 = ssub.s32 15, %s96
        %s98 = scalar_lea.vmem %s0, %s97
        %v99 = vld [vmem:[%s98] sm:$0xff]
        %v100 = vld [vmem:[%s98 + $0x8] sm:$0xff]
        %vm101 = vcmask 261120
        %102 = vst.msk [vmem:[%s94] sm:$0xff] %vm101, %v99
        %103 = vst.msk [vmem:[%s94 + $0x8] sm:$0xff] %vm101, %v100
        %s104 = ssub.s32 14, %s96
        %s105 = scalar_lea.vmem %s0, %s104
        %v106 = vld [vmem:[%s105] sm:$0xff]
        %v107 = vld [vmem:[%s105 + $0x8] sm:$0xff]
        %s108 = scalar_lea.vmem %s94, 16 [#allocation2]
        %109 = vst.msk [vmem:[%s108] sm:$0xff] %vm101, %v106
        %110 = vst.msk [vmem:[%s108 + $0x8] sm:$0xff] %vm101, %v107
        %s111 = ssub.s32 13, %s96
        %s112 = scalar_lea.vmem %s0, %s111
        %v113 = vld [vmem:[%s112] sm:$0xff]
        %v114 = vld [vmem:[%s112 + $0x8] sm:$0xff]
        %s115 = scalar_lea.vmem %s94, 32 [#allocation2]
        %116 = vst.msk [vmem:[%s115] sm:$0xff] %vm101, %v113
        %117 = vst.msk [vmem:[%s115 + $0x8] sm:$0xff] %vm101, %v114
        %s118 = ssub.s32 12, %s96
        %s119 = scalar_lea.vmem %s0, %s118
        %v120 = vld [vmem:[%s119] sm:$0xff]
        %v121 = vld [vmem:[%s119 + $0x8] sm:$0xff]
        %s122 = scalar_lea.vmem %s94, 48 [#allocation2]
        %123 = vst.msk [vmem:[%s122] sm:$0xff] %vm101, %v120
        %124 = vst.msk [vmem:[%s122 + $0x8] sm:$0xff] %vm101, %v121
        %s125 = ssub.s32 11, %s96
        %s126 = scalar_lea.vmem %s0, %s125
        %v127 = vld [vmem:[%s126] sm:$0xff]
        %v128 = vld [vmem:[%s126 + $0x8] sm:$0xff]
        %s129 = scalar_lea.vmem %s94, 64 [#allocation2]
        %130 = vst.msk [vmem:[%s129] sm:$0xff] %vm101, %v127
        %131 = vst.msk [vmem:[%s129 + $0x8] sm:$0xff] %vm101, %v128
        %s132 = ssub.s32 10, %s96
        %s133 = scalar_lea.vmem %s0, %s132
        %v134 = vld [vmem:[%s133] sm:$0xff]
        %v135 = vld [vmem:[%s133 + $0x8] sm:$0xff]
        %s136 = scalar_lea.vmem %s94, 80 [#allocation2]
        %137 = vst.msk [vmem:[%s136] sm:$0xff] %vm101, %v134
        %138 = vst.msk [vmem:[%s136 + $0x8] sm:$0xff] %vm101, %v135
        %s139 = ssub.s32 9, %s96
        %s140 = scalar_lea.vmem %s0, %s139
        %v141 = vld [vmem:[%s140] sm:$0xff]
        %v142 = vld [vmem:[%s140 + $0x8] sm:$0xff]
        %s143 = scalar_lea.vmem %s94, 96 [#allocation2]
        %144 = vst.msk [vmem:[%s143] sm:$0xff] %vm101, %v141
        %145 = vst.msk [vmem:[%s143 + $0x8] sm:$0xff] %vm101, %v142
        %s146 = ssub.s32 8, %s96
        %s147 = scalar_lea.vmem %s0, %s146
        %v148 = vld [vmem:[%s147] sm:$0xff]
        %v149 = vld [vmem:[%s147 + $0x8] sm:$0xff]
        %s150 = scalar_lea.vmem %s94, 112 [#allocation2]
        %151 = vst.msk [vmem:[%s150] sm:$0xff] %vm101, %v148
        %152 = vst.msk [vmem:[%s150 + $0x8] sm:$0xff] %vm101, %v149
        %s153 = sand.u32 %s44, 1
        %s154 = scalar_lea.sflag [#allocation3], %s153
        %s155 = sand.u32 %s44, 1
        %s156 = smul.addr %s155, 128
        %s157 = scalar_lea.vmem [#allocation2], %s156
        // Predicated region
        $region25: #{relative_position_embeddings.1} parent=23 // pred_check
          %p158 = pneg %p54
        $region26: #{relative_position_embeddings.1} parent=23 // pred_check_branch
          %160 = sbr.rel (%p158) target = $region28
        $region27: #{relative_position_embeddings.1} parent=23 // pred_region
          %s161 = smul.u32 8, %s15
          %s163 = ssub.s32 2048, 2048
          %164 = vsyncadd %s154, %s163
          %s165 = smul.addr %s161, 2
          %s166 = smul.addr %s165, 128
          %s167 = scalar_lea.hbm %s1, %s166
          %s168 = sshll.u32 %s157, 4
          %s169 = int_to_ptr.vmem [resolvable:$true] %s168
          %174 = dma.vmem_to_hbm [thread:$0]  %s169, 2048, %s167, %s154, 128, 128, 8
        $region28: #{relative_position_embeddings.1} parent=23 // pred_fallthru
          _
      $region24: #{relative_position_embeddings.1} parent=5 // pred_fallthru
        _
      %p175 = scmp.le.s32.totalorder 2, %s10
      // Predicated region
      $region29: #{relative_position_embeddings.1} parent=5 // pred_check
        %p176 = pneg %p175
      $region30: #{relative_position_embeddings.1} parent=5 // pred_check_branch
        %178 = sbr.rel (%p176) target = $region32
      $region31: #{relative_position_embeddings.1} parent=5 // pred_region
        %s179 = ssub.s32 %s10, 2
        // Predicated region
        $region33: #{relative_position_embeddings.1} parent=31 // pred_check
          %p180 = pneg %p60
        $region34: #{relative_position_embeddings.1} parent=31 // pred_check_branch
          %182 = sbr.rel (%p180) target = $region36
        $region35: #{relative_position_embeddings.1} parent=31 // pred_region
          %s183 = sand.u32 %s45, 1
          %s184 = scalar_lea.sflag [#allocation3], %s183
          %s185 = sand.u32 %s45, 1
          %s186 = smul.addr %s185, 128
          %s187 = scalar_lea.vmem [#allocation2], %s186
          %188 = dma.done %s184, 2048
        $region36: #{relative_position_embeddings.1} parent=31 // pred_fallthru
          _
      $region32: #{relative_position_embeddings.1} parent=5 // pred_fallthru
        _
    $region6: #{relative_position_embeddings.1} parent=1 // loop_footer
      %s14 = sadd.s32 1, %s10
    $region7: #{relative_position_embeddings.1} parent=1 // loop_footer_branch
      %9 = sbr.rel target = $region3
    $region8: #{relative_position_embeddings.1} parent=1 // loop_exit
      _
    %189 = vsyncpa [#allocation3], 1
    %s190 = scalar_lea.sflag [#allocation3], 1
    %191 = vsyncpa %s190, 1

</llo_original>
